<compile_context>
chip_gen: v7x
topology: tpu7x:2x2x1
jax: 0.10.0
libtpu: 0.0.40
codegen_flags: <defaults>
</compile_context>

<pallas_src>
import functools

import jax
import jax.numpy as jnp
from jax.experimental import pallas as pl
from jax.experimental.pallas import tpu as pltpu


def _round_up(v: int, m: int) -> int:
    return (v + m - 1) // m * m


def _pick_tile(dim: int, max_tile: int, *, align: int = 128, min_tile: int = 256):
    """Pick (tile, padded_dim): tile is a multiple of `align`, <= max_tile.

    Prefers the least padding of `dim`, tie-broken toward the largest tile,
    so e.g. N=768 -> (384, 768) rather than (512, 1024).
    """
    dp = _round_up(dim, align)
    if dp <= max_tile:
        return dp, dp
    best = None
    t = max_tile
    while t >= min_tile:
        padded = _round_up(dp, t)
        key = (padded, -t)
        if best is None or key < best[0]:
            best = (key, t, padded)
        t -= align
    return best[1], best[2]


def _default_use_int8_mxu() -> bool:
    """Use the native int8 MXU only where we know it exists (v5*/v6*).

    v7x has no integer MXU (bf16/fp8 only) and the bf16 fallback path is
    bit-exact everywhere, so it is the safe default for unknown devices.
    Override explicitly via INTLoRALayerPallas(use_int8_mxu=...).
    """
    try:
        kind = jax.devices()[0].device_kind.lower()
    except Exception:
        return False
    return ("v5" in kind) or ("v6" in kind)


def _int_linear_kernel(x_ref, w_ref, b_ref, o_ref, acc_ref, *, alpha, use_int8_mxu):
    """One (tm, tn) output tile, accumulated over the K grid axis.

    x_ref:   (tm, tk) int8
    w_ref:   (tk, tn) int8 (or bf16 on the v7x path; weight is (K, N))
    b_ref:   (1,  tn) f32   -- already beta * bias
    o_ref:   (tm, tn) int8
    acc_ref: (tm, tn) int32 VMEM scratch (exact accumulator).
    """
    k = pl.program_id(2)

    @pl.when(k == 0)
    def _():
        acc_ref[...] = jnp.zeros_like(acc_ref)

    if use_int8_mxu:
        # Native int8 MXU feed, exact int32 accumulation (v5e / v6e).
        acc_ref[...] += jax.lax.dot_general(
            x_ref[...], w_ref[...],
            dimension_numbers=(((1,), (0,)), ((), ())),
            preferred_element_type=jnp.int32,
        )
    else:
        # v7x path: bf16 operands into the MXU, f32 accumulate per K-chunk.
        # Exact: int8 values are exact in bf16 and the per-chunk partial
        # satisfies |sum| <= 128*128*tk <= 2^24 (tk <= 1024), so the f32->i32
        # truncation is lossless; the running sum lives in int32 scratch.
        w = w_ref[...]
        if w.dtype != jnp.bfloat16:
            w = w.astype(jnp.bfloat16)
        part = jax.lax.dot_general(
            x_ref[...].astype(jnp.bfloat16), w,
            dimension_numbers=(((1,), (0,)), ((), ())),
            preferred_element_type=jnp.float32,
        )
        acc_ref[...] += part.astype(jnp.int32)

    @pl.when(k == pl.num_programs(2) - 1)
    def _():
        y = jnp.float32(alpha) * acc_ref[...].astype(jnp.float32) + b_ref[...]
        # TODO(synk): jnp.round is round-half-to-even; confirm it matches the
        # CUTLASS/torch-int requant epilogue rounding mode at exact .5 values.
        y = jnp.clip(jnp.round(y), -128.0, 127.0)
        o_ref[...] = y.astype(jnp.int8)


def int_lora_linear(x_int8, weight_kn, bias_f32, alpha, *,
                    tk, tn, use_int8_mxu, out_features):
    """W8A8B8O8 linear: int8 in, int8 out.

    x_int8:    (..., K) int8
    weight_kn: (Kp, Np) int8|bf16 -- pre-transposed, pre-padded at setup
    bias_f32:  (1, Np)  f32       -- pre-scaled by beta, pre-padded at setup
    """
    *lead, K = x_int8.shape
    Kp, Np = weight_kn.shape
    assert K <= Kp and Kp % tk == 0 and Np % tn == 0
    assert tk <= 1024  # bf16-path exactness bound (128*128*tk <= 2^24)

    x2d = x_int8.reshape(-1, K)
    M = x2d.shape[0]

    # int8-friendly M tile: multiple of 32 (int8 sublane packing), up to 512.
    tm = min(512, _round_up(max(M, 1), 32))
    grid_n = Np // tn
    grid_k = Kp // tk

    # v7x has 2 TensorCores: keep >= 2 blocks along a parallel grid axis.
    if (not use_int8_mxu) and grid_n == 1 and pl.cdiv(M, tm) == 1 and M >= 64:
        tm = _round_up(pl.cdiv(M, 2), 32)

    # Pad the activation along K only (zeros do not change the contraction).
    # The trailing M tile is left ragged (Pallas masks the edge block), except
    # for the tiny-M case where a cheap pad keeps every block in-bounds.
    pad_m = tm - M if M < tm else 0
    pad_k = Kp - K
    if pad_m or pad_k:
        x2d = jnp.pad(x2d, ((0, pad_m), (0, pad_k)))
    Mo = M + pad_m
    grid_m = pl.cdiv(Mo, tm)

    kernel = functools.partial(_int_linear_kernel, alpha=float(alpha),
                               use_int8_mxu=use_int8_mxu)
    # Explicit scoped-VMEM limit: working set is a few MiB, but make room so
    # the compiler never falls back to smaller windows.  Keep headroom on the
    # bf16 (v7x) path where physical VMEM is only 64 MiB.
    vmem_limit = (64 if use_int8_mxu else 48) * 1024 * 1024

    w_bytes = Kp * Np * jnp.dtype(weight_kn.dtype).itemsize

    out2d = pl.pallas_call(
        kernel,
        out_shape=jax.ShapeDtypeStruct((Mo, Np), jnp.int8),
        grid_spec=pltpu.PrefetchScalarGridSpec(
            num_scalar_prefetch=0,
            grid=(grid_m, grid_n, grid_k),
            in_specs=[
                pl.BlockSpec((tm, tk), lambda i, j, k: (i, k)),   # x tile
                pl.BlockSpec((tk, tn), lambda i, j, k: (k, j)),   # w tile (K,N)
                pl.BlockSpec((1, tn), lambda i, j, k: (0, j)),    # beta*bias tile
            ],
            out_specs=pl.BlockSpec((tm, tn), lambda i, j, k: (i, j)),
            scratch_shapes=[pltpu.VMEM((tm, tn), jnp.int32)],
        ),
        compiler_params=pltpu.CompilerParams(
            dimension_semantics=("parallel", "parallel", "arbitrary"),
            vmem_limit_bytes=vmem_limit),
        cost_estimate=pl.CostEstimate(
            flops=2 * grid_m * tm * Np * Kp,
            transcendentals=0,
            bytes_accessed=(grid_n * Mo * Kp          # x re-fetched per N tile
                            + grid_m * w_bytes        # w re-fetched per M tile
                            + Mo * Np                 # int8 output
                            + grid_m * 4 * Np)),      # f32 bias
    )(x2d, weight_kn, bias_f32)

    return out2d[:M, :out_features].reshape(*lead, out_features)


class INTLoRALayerPallas:
    """JAX/Pallas port of INTLoRALayer (proxy = W8A8B8O8Linear)."""

    def __init__(self, in_features, out_features, alpha=1.0, beta=1.0, *,
                 key, use_int8_mxu=None):
        self.in_features = in_features
        self.out_features = out_features
        self.alpha = float(alpha)
        self.beta = float(beta)
        self.use_int8_mxu = (_default_use_int8_mxu()
                             if use_int8_mxu is None else bool(use_int8_mxu))

        # Synthetic params matching W8A8B8O8Linear.__init__:
        #   weight ~ randint int8, shape (out_features, in_features)
        #   bias   = zeros int8,   shape (1, out_features)
        self.weight = jax.random.randint(
            key, (out_features, in_features), -127, 127, dtype=jnp.int32
        ).astype(jnp.int8)
        self.bias = jnp.zeros((1, out_features), dtype=jnp.int8)

        # ---- one-time parameter prep (no per-call weight/bias HBM passes) ----
        # tk <= 1024 keeps the v7x bf16 path bit-exact (128*128*1024 = 2^24).
        self.tk, Kp = _pick_tile(in_features, 1024, min_tile=256)
        self.tn, Np = _pick_tile(out_features, 512, min_tile=256)

        w_kn = jnp.transpose(self.weight)                 # (K, N): natural MXU feed
        w_kn = jnp.pad(w_kn, ((0, Kp - in_features), (0, Np - out_features)))
        if not self.use_int8_mxu:
            # v7x: cache the weight pre-cast to bf16 so the int8->bf16 cast is
            # not redone for every M tile (costs 2x weight HBM bytes).
            w_kn = w_kn.astype(jnp.bfloat16)
        self.weight_kn = w_kn

        b = self.beta * self.bias.astype(jnp.float32)     # fold beta at setup
        self.bias_f32 = jnp.pad(b, ((0, 0), (0, Np - out_features)))

    def __call__(self, x_int8):
        return int_lora_linear(x_int8, self.weight_kn, self.bias_f32, self.alpha,
                               tk=self.tk, tn=self.tn,
                               use_int8_mxu=self.use_int8_mxu,
                               out_features=self.out_features)


def _reference(x_int8, weight_nk_int8, bias_int8, alpha, beta):
    # Exact integer reference mirroring the kernel math.
    acc = jnp.einsum("...k,nk->...n",
                     x_int8.astype(jnp.int32), weight_nk_int8.astype(jnp.int32))
    y = (jnp.float32(alpha) * acc.astype(jnp.float32)
         + jnp.float32(beta) * bias_int8.astype(jnp.float32))
    return jnp.clip(jnp.round(y), -128, 127).astype(jnp.int8)


if __name__ == "__main__":
    key = jax.random.PRNGKey(0)
    k_w1, k_x1, k_w2, k_x2 = jax.random.split(key, 4)

    # --- small shape (single tile after cheap padding) ---
    batch, seq, K, N = 2, 8, 32, 64
    layer = INTLoRALayerPallas(K, N, alpha=0.004, beta=1.0, key=k_w1)
    x = jax.random.randint(
        k_x1, (batch, seq, K), -127, 128, dtype=jnp.int32).astype(jnp.int8)
    y = jax.block_until_ready(layer(x))
    y_ref = _reference(x, layer.weight, layer.bias, layer.alpha, layer.beta)
    assert y.shape == (batch, seq, N) and y.dtype == jnp.int8
    assert bool(jnp.all(y == y_ref))

    # --- larger shape: multi-tile (M, N, K) grid, ragged M tile, K padding ---
    batch2, seq2, K2, N2 = 2, 300, 1500, 768   # M=600 -> 2 M-tiles; 2 N-tiles; 2 K-steps
    layer2 = INTLoRALayerPallas(K2, N2, alpha=0.0002, beta=1.0, key=k_w2)
    x2 = jax.random.randint(
        k_x2, (batch2, seq2, K2), -127, 128, dtype=jnp.int32).astype(jnp.int8)
    y2 = jax.block_until_ready(layer2(x2))
    y2_ref = _reference(x2, layer2.weight, layer2.bias, layer2.alpha, layer2.beta)
    assert y2.shape == (batch2, seq2, N2) and y2.dtype == jnp.int8
    assert bool(jnp.all(y2 == y2_ref))

    print("KERNEL_OK")
</pallas_src>

<mosaic_0001>
module attributes {stable_mosaic.version = 11 : i64} {
  func.func @_int_linear_kernel(%arg0: i32, %arg1: i32, %arg2: i32, %arg3: memref<32x128xi8, #tpu.memory_space<vmem>>, %arg4: memref<128x128xbf16, #tpu.memory_space<vmem>>, %arg5: memref<1x128xf32, #tpu.memory_space<vmem>>, %arg6: memref<32x128xi8, #tpu.memory_space<vmem>>, %arg7: memref<32x128xi32, #tpu.memory_space<vmem>>) attributes {dimension_semantics = [#tpu.dimension_semantics<parallel>, #tpu.dimension_semantics<parallel>, #tpu.dimension_semantics<arbitrary>], iteration_bounds = array<i64: 1, 1, 1>, scalar_prefetch = 0 : i64, scratch_operands = 1 : i64, tpu.core_type = #tpu.core_type<tc>, window_params = [{transform_indices = @transform_0, window_bounds = array<i64: 32, 128>}, {transform_indices = @transform_1, window_bounds = array<i64: 128, 128>}, {transform_indices = @transform_2, window_bounds = array<i64: 1, 128>}, {transform_indices = @transform_3, window_bounds = array<i64: 32, 128>}]} {
    %c0_i32 = arith.constant 0 : i32
    %0 = arith.cmpi eq, %arg2, %c0_i32 : i32
    %1 = arith.extui %0 : i1 to i32
    %c0_i32_0 = arith.constant 0 : i32
    %2 = arith.cmpi ne, %1, %c0_i32_0 : i32
    scf.if %2 {
      %c0_i32_10 = arith.constant 0 : i32
      %14 = vector.broadcast %c0_i32_10 : i32 to vector<32x128xi32>
      %c0_11 = arith.constant 0 : index
      %c0_12 = arith.constant 0 : index
      %15 = vector.load %arg7[%c0_11, %c0_12] : memref<32x128xi32, #tpu.memory_space<vmem>>, vector<32x128xi32>
      tpu.vector_store %arg7[%c0_11, %c0_12], %14 {strides = array<i32>} : memref<32x128xi32, #tpu.memory_space<vmem>>, vector<32x128xi32>,
    } else {
    }
    %c0 = arith.constant 0 : index
    %c0_1 = arith.constant 0 : index
    %3 = vector.load %arg4[%c0, %c0_1] : memref<128x128xbf16, #tpu.memory_space<vmem>>, vector<128x128xbf16>
    %c0_2 = arith.constant 0 : index
    %c0_3 = arith.constant 0 : index
    %4 = vector.load %arg3[%c0_2, %c0_3] : memref<32x128xi8, #tpu.memory_space<vmem>>, vector<32x128xi8>
    %5 = arith.sitofp %4 : vector<32x128xi8> to vector<32x128xbf16>
    %cst = arith.constant dense<0.000000e+00> : vector<32x128xf32>
    %6 = tpu.matmul %5, %3, %cst {dimension_numbers = #tpu.dot_dimension_numbers<[1], [0], [0], [1], [0, 0, 1, 1], [], []>} : vector<32x128xbf16>, vector<128x128xbf16>, vector<32x128xf32> -> vector<32x128xf32>
    %c0_4 = arith.constant 0 : index
    %c0_5 = arith.constant 0 : index
    %7 = vector.load %arg7[%c0_4, %c0_5] : memref<32x128xi32, #tpu.memory_space<vmem>>, vector<32x128xi32>
    %8 = arith.fptosi %6 : vector<32x128xf32> to vector<32x128xi32>
    %9 = arith.addi %7, %8 : vector<32x128xi32>
    %c0_6 = arith.constant 0 : index
    %c0_7 = arith.constant 0 : index
    %10 = vector.load %arg7[%c0_6, %c0_7] : memref<32x128xi32, #tpu.memory_space<vmem>>, vector<32x128xi32>
    tpu.vector_store %arg7[%c0_6, %c0_7], %9 {strides = array<i32>} : memref<32x128xi32, #tpu.memory_space<vmem>>, vector<32x128xi32>,
    %c0_i32_8 = arith.constant 0 : i32
    %11 = arith.cmpi eq, %arg2, %c0_i32_8 : i32
    %12 = arith.extui %11 : i1 to i32
    %c0_i32_9 = arith.constant 0 : i32
    %13 = arith.cmpi ne, %12, %c0_i32_9 : i32
    scf.if %13 {
      %c0_10 = arith.constant 0 : index
      %c0_11 = arith.constant 0 : index
      %14 = vector.load %arg7[%c0_10, %c0_11] : memref<32x128xi32, #tpu.memory_space<vmem>>, vector<32x128xi32>
      %15 = arith.sitofp %14 : vector<32x128xi32> to vector<32x128xf32>
      %cst_12 = arith.constant 4.000000e-03 : f32
      %16 = vector.broadcast %cst_12 : f32 to vector<32x128xf32>
      %17 = arith.mulf %16, %15 : vector<32x128xf32>
      %c0_13 = arith.constant 0 : index
      %c0_14 = arith.constant 0 : index
      %18 = vector.load %arg5[%c0_13, %c0_14] : memref<1x128xf32, #tpu.memory_space<vmem>>, vector<1x128xf32>
      %19 = vector.broadcast %18 : vector<1x128xf32> to vector<32x128xf32>
      %20 = arith.addf %17, %19 : vector<32x128xf32>
      %21 = math.roundeven %20 : vector<32x128xf32>
      %cst_15 = arith.constant -1.280000e+02 : f32
      %cst_16 = arith.constant 1.270000e+02 : f32
      %22 = vector.broadcast %cst_15 : f32 to vector<32x128xf32>
      %23 = arith.maximumf %22, %21 : vector<32x128xf32>
      %24 = vector.broadcast %cst_16 : f32 to vector<32x128xf32>
      %25 = arith.minimumf %24, %23 : vector<32x128xf32>
      %26 = arith.fptosi %25 : vector<32x128xf32> to vector<32x128xi8>
      %c0_17 = arith.constant 0 : index
      %c0_18 = arith.constant 0 : index
      %27 = vector.load %arg6[%c0_17, %c0_18] : memref<32x128xi8, #tpu.memory_space<vmem>>, vector<32x128xi8>
      tpu.vector_store %arg6[%c0_17, %c0_18], %26 {strides = array<i32>} : memref<32x128xi8, #tpu.memory_space<vmem>>, vector<32x128xi8>,
    } else {
    }
    return
  }
  func.func @transform_0(%arg0: i32, %arg1: i32, %arg2: i32) -> (i32, i32) {
    %c0_i32 = arith.constant 0 : i32
    return %arg0, %arg2 : i32, i32
  }
  func.func @transform_1(%arg0: i32, %arg1: i32, %arg2: i32) -> (i32, i32) {
    %c0_i32 = arith.constant 0 : i32
    return %arg2, %arg1 : i32, i32
  }
  func.func @transform_2(%arg0: i32, %arg1: i32, %arg2: i32) -> (i32, i32) {
    %c0_i32 = arith.constant 0 : i32
    %c0_i32_0 = arith.constant 0 : i32
    return %c0_i32, %arg1 : i32, i32
  }
  func.func @transform_3(%arg0: i32, %arg1: i32, %arg2: i32) -> (i32, i32) {
    %c0_i32 = arith.constant 0 : i32
    return %arg0, %arg1 : i32, i32
  }
}

</mosaic_0001>

<llo_original>
// kernel: tpu_custom_call.1
$region0: #{tpu_custom_call.1}
  #allocation0 [shape = 'u32[]', space=smem, size = 0x4, offset = 0x4, fixed_abs, tag = 'smem constant byte address 0x4 - core index']
  #allocation1 [shape = 'u32[144,128]{1,0:T(1,128)}', space=vmem, size = 0x12000, scoped, tag = 'internal scratch']
  #allocation2 [shape = 's32[32,128]{1,0:T(8,128)}', space=vmem, size = 0x4000, scoped, tag = 'scratch operand']
  %s0 = inlined_call_operand.hbm [shape: s8[32,128], index: 0, kind: input, shape index: {}]
  %s1 = inlined_call_operand.hbm [shape: bf16[128,128], index: 1, kind: input, shape index: {}]
  %s2 = inlined_call_operand.vmem [shape: f32[1,128], index: 2, kind: input, shape index: {}]
  %s3 = inlined_call_operand.hbm [shape: s8[32,128], index: 3, kind: output, shape index: {}]
  %s4 = sld [smem:[#allocation0]]
  $region38: #{tpu_custom_call.1} parent=0
    _
  %s6 = ssub.s32 1, %s4
  %s7 = scalar_select 0, %s6, %s4
  $region1: #{tpu_custom_call.1} parent=0
    #allocation3 [shape = 'u8[4096]{0}', space=vmem, size = 0x1000, scoped, tag = 'input window, operand 0, single buffered']
    #allocation4 [shape = 's32[1]{0}', space=sflag, size = 0x4, scoped, tag = 'scoped memory for tpu_custom_call.1']
    #allocation5 [shape = 's32[1]{0}', space=sflag, size = 0x4, scoped, tag = 'scoped memory for tpu_custom_call.1']
    #allocation6 [shape = 'u8[32768]{0}', space=vmem, size = 0x8000, scoped, tag = 'input window, operand 1, single buffered']
    #allocation7 [shape = 's32[1]{0}', space=sflag, size = 0x4, scoped, tag = 'scoped memory for tpu_custom_call.1']
    #allocation8 [shape = 'u8[4096]{0}', space=vmem, size = 0x1000, scoped, tag = 'output window, operand 0, single buffered']
    %8 = vsyncpa [#allocation4], 0
    %9 = vsyncpa [#allocation7], 0
    %10 = vsyncpa [#allocation5], 0
    // Predicated region
    $region2: #{tpu_custom_call.1} parent=1 // pred_check
      _
    $region3: #{tpu_custom_call.1} parent=1 // pred_check_branch
      %12 = sbr.rel (0) target = $region5
    $region4: #{tpu_custom_call.1} parent=1 // pred_region
      %s14 = ssub.s32 128, 128
      %15 = vsyncadd [#allocation4], %s14
      %s17 = sshll.u32 [#allocation3], 4
      %s18 = int_to_ptr.vmem [resolvable:$true] %s17
      %20 = dma.hbm_to_vmem [thread:$0]  %s0, 128, %s18, [#allocation4]
    $region5: #{tpu_custom_call.1} parent=1 // pred_fallthru
      _
    // Predicated region
    $region6: #{tpu_custom_call.1} parent=1 // pred_check
      _
    $region7: #{tpu_custom_call.1} parent=1 // pred_check_branch
      %22 = sbr.rel (0) target = $region9
    $region8: #{tpu_custom_call.1} parent=1 // pred_region
      %s24 = ssub.s32 1024, 1024
      %25 = vsyncadd [#allocation7], %s24
      %s26 = sshll.u32 [#allocation6], 4
      %s27 = int_to_ptr.vmem [resolvable:$true] %s26
      %32 = dma.hbm_to_vmem [thread:$0]  %s1, 1024, %s27, [#allocation7], 64, 64, 4
    $region9: #{tpu_custom_call.1} parent=1 // pred_fallthru
      _
    // Predicated region
    $region10: #{tpu_custom_call.1} parent=1 // pred_check
      _
    $region11: #{tpu_custom_call.1} parent=1 // pred_check_branch
      %34 = sbr.rel (0) target = $region13
    $region12: #{tpu_custom_call.1} parent=1 // pred_region
      _
    $region13: #{tpu_custom_call.1} parent=1 // pred_fallthru
      _
    // Predicated region
    $region14: #{tpu_custom_call.1} parent=1 // pred_check
      _
    $region15: #{tpu_custom_call.1} parent=1 // pred_check_branch
      %36 = sbr.rel (0) target = $region17
    $region16: #{tpu_custom_call.1} parent=1 // pred_region
      %37 = dma.done [#allocation4], 128
    $region17: #{tpu_custom_call.1} parent=1 // pred_fallthru
      _
    // Predicated region
    $region18: #{tpu_custom_call.1} parent=1 // pred_check
      _
    $region19: #{tpu_custom_call.1} parent=1 // pred_check_branch
      %39 = sbr.rel (0) target = $region21
    $region20: #{tpu_custom_call.1} parent=1 // pred_region
      %40 = dma.done [#allocation7], 1024
    $region21: #{tpu_custom_call.1} parent=1 // pred_fallthru
      _
    %p42 = scmp.eq.s32.totalorder 0, 0
    // Predicated region
    $region22: #{tpu_custom_call.1} parent=1 // pred_check
      %p43 = pneg %p42
    $region23: #{tpu_custom_call.1} parent=1 // pred_check_branch
      %45 = sbr.rel (%p43) target = $region25
    $region24: #{tpu_custom_call.1} parent=1 // pred_region
      %46 = vst [vmem:[#allocation2] sm:$0xff] 0
      %47 = vst [vmem:[#allocation2 + $0x8] sm:$0xff] 0
      %48 = vst [vmem:[#allocation2 + $0x10] sm:$0xff] 0
      %49 = vst [vmem:[#allocation2 + $0x18] sm:$0xff] 0
    $region25: #{tpu_custom_call.1} parent=1 // pred_fallthru
      _
    %v50 = vld [vmem:[#allocation6] sm:$0xf]
    %v51 = vld [vmem:[#allocation6 + $0x4] sm:$0xf]
    %v52 = vld [vmem:[#allocation6 + $0x8] sm:$0xf]
    %v53 = vld [vmem:[#allocation6 + $0xc] sm:$0xf]
    %v54 = vld [vmem:[#allocation6 + $0x10] sm:$0xf]
    %v55 = vld [vmem:[#allocation6 + $0x14] sm:$0xf]
    %v56 = vld [vmem:[#allocation6 + $0x18] sm:$0xf]
    %v57 = vld [vmem:[#allocation6 + $0x1c] sm:$0xf]
    %v58 = vld [vmem:[#allocation6 + $0x20] sm:$0xf]
    %v59 = vld [vmem:[#allocation6 + $0x24] sm:$0xf]
    %v60 = vld [vmem:[#allocation6 + $0x28] sm:$0xf]
    %v61 = vld [vmem:[#allocation6 + $0x2c] sm:$0xf]
    %v62 = vld [vmem:[#allocation6 + $0x30] sm:$0xf]
    %v63 = vld [vmem:[#allocation6 + $0x34] sm:$0xf]
    %v64 = vld [vmem:[#allocation6 + $0x38] sm:$0xf]
    %v65 = vld [vmem:[#allocation6 + $0x3c] sm:$0xf]
    %v66 = vld [vmem:[#allocation3] sm:$0xff]
    %v67 = vunpack.c.l.s8.bf16 %v66
    %v68 = vunpack.c.h.s8.bf16 %v66
    %v85 = vunpack.c.l.b16 %v50
    %v86 = vunpack.c.l.b16 %v51
    %v87 = vunpack.c.l.b16 %v52
    %v88 = vunpack.c.l.b16 %v53
    %v89 = vunpack.c.l.b16 %v54
    %v90 = vunpack.c.l.b16 %v55
    %v91 = vunpack.c.l.b16 %v56
    %v92 = vunpack.c.l.b16 %v57
    %v93 = vunpack.c.l.b16 %v58
    %v94 = vunpack.c.l.b16 %v59
    %v95 = vunpack.c.l.b16 %v60
    %v96 = vunpack.c.l.b16 %v61
    %v97 = vunpack.c.l.b16 %v62
    %v98 = vunpack.c.l.b16 %v63
    %v99 = vunpack.c.l.b16 %v64
    %v100 = vunpack.c.l.b16 %v65
    %v101 = vpack.c.b16 %v86, %v85
    %v102 = vpack.c.b16 %v88, %v87
    %v103 = vpack.c.b16 %v90, %v89
    %v104 = vpack.c.b16 %v92, %v91
    %v105 = vpack.c.b16 %v94, %v93
    %v106 = vpack.c.b16 %v96, %v95
    %v107 = vpack.c.b16 %v98, %v97
    %v108 = vpack.c.b16 %v100, %v99
    %117 = vmatprep.subr.bf16.mxu0 0
    %118 = vmatpush1.bf16.msra.mxu0 %v101
    %119 = vmatprep.subr.bf16.mxu0 0
    %120 = vmatpush1.bf16.msra.mxu0 %v102
    %121 = vmatprep.subr.bf16.mxu0 0
    %122 = vmatpush1.bf16.msra.mxu0 %v103
    %123 = vmatprep.subr.bf16.mxu0 0
    %124 = vmatpush1.bf16.msra.mxu0 %v104
    %125 = vmatprep.subr.bf16.mxu0 0
    %126 = vmatpush1.bf16.msra.mxu0 %v105
    %127 = vmatprep.subr.bf16.mxu0 0
    %128 = vmatpush1.bf16.msra.mxu0 %v106
    %129 = vmatprep.subr.bf16.mxu0 0
    %130 = vmatpush1.bf16.msra.mxu0 %v107
    %131 = vmatprep.subr.bf16.mxu0 0
    %132 = vmatpush1.bf16.msra.mxu0 %v108
    %133 = vmatprep.subr.bf16.mxu0 0
    %134 = vmatpush1.bf16.msra.mxu0 0
    %135 = vmatprep.subr.bf16.mxu0 0
    %136 = vmatpush1.bf16.msra.mxu0 0
    %137 = vmatprep.subr.bf16.mxu0 0
    %138 = vmatpush1.bf16.msra.mxu0 0
    %139 = vmatprep.subr.bf16.mxu0 0
    %140 = vmatpush1.bf16.msra.mxu0 0
    %141 = vmatprep.subr.bf16.mxu0 0
    %142 = vmatpush1.bf16.msra.mxu0 0
    %143 = vmatprep.subr.bf16.mxu0 0
    %144 = vmatpush1.bf16.msra.mxu0 0
    %145 = vmatprep.subr.bf16.mxu0 0
    %146 = vmatpush1.bf16.msra.mxu0 0
    %147 = vmatprep.subr.bf16.mxu0 0
    %148 = vmatpush1.bf16.msra.mxu0 0
    %149 = vmatprep.mubr.bf16.mxu0 0
    %150 = vmatmul.mubr.bf16.gmra.mrb[0].mxu0 %v67
    %v151 = vpop.f32.mrb[0].mxu0
    %v152 = vadd.f32 0.0, %v151
    %v153 = vpop.f32.mrb[0].mxu0
    %v154 = vpop.f32.mrb[0].mxu0
    %v155 = vadd.f32 0.0, %v154
    %v156 = vpop.f32.mrb[0].mxu0
    %157 = vmatprep.mubr.bf16.mxu0 0
    %158 = vmatmul.mubr.bf16.gmra.mrb[0].mxu0 %v68
    %v159 = vpop.f32.mrb[0].mxu0
    %v160 = vadd.f32 0.0, %v159
    %v161 = vpop.f32.mrb[0].mxu0
    %v162 = vpop.f32.mrb[0].mxu0
    %v163 = vadd.f32 0.0, %v162
    %v164 = vpop.f32.mrb[0].mxu0
    %165 = vdwg.mxu0
    %v166 = vld [vmem:[#allocation2] sm:$0xff]
    %v167 = vld [vmem:[#allocation2 + $0x8] sm:$0xff]
    %v168 = vld [vmem:[#allocation2 + $0x10] sm:$0xff]
    %v169 = vld [vmem:[#allocation2 + $0x18] sm:$0xff]
    %v170 = vcvt.f32.s32.to.zero.pseudo %v152
    %v171 = vcvt.f32.s32.to.zero.pseudo %v155
    %v172 = vcvt.f32.s32.to.zero.pseudo %v160
    %v173 = vcvt.f32.s32.to.zero.pseudo %v163
    %v174 = vadd.s32 %v166, %v170
    %v175 = vadd.s32 %v167, %v171
    %v176 = vadd.s32 %v168, %v172
    %v177 = vadd.s32 %v169, %v173
    %178 = vst [vmem:[#allocation2] sm:$0xff] %v174
    %179 = vst [vmem:[#allocation2 + $0x8] sm:$0xff] %v175
    %180 = vst [vmem:[#allocation2 + $0x10] sm:$0xff] %v176
    %181 = vst [vmem:[#allocation2 + $0x18] sm:$0xff] %v177
    // Predicated region
    $region26: #{tpu_custom_call.1} parent=1 // pred_check
      %p182 = pneg %p42
    $region27: #{tpu_custom_call.1} parent=1 // pred_check_branch
      %184 = sbr.rel (%p182) target = $region29
    $region28: #{tpu_custom_call.1} parent=1 // pred_region
      %v185 = vld [vmem:[#allocation2] sm:$0xff]
      %v186 = vld [vmem:[#allocation2 + $0x8] sm:$0xff]
      %v187 = vld [vmem:[#allocation2 + $0x10] sm:$0xff]
      %v188 = vld [vmem:[#allocation2 + $0x18] sm:$0xff]
      %v189 = vcvt.s32.f32 %v185
      %v190 = vcvt.s32.f32 %v186
      %v191 = vcvt.s32.f32 %v187
      %v192 = vcvt.s32.f32 %v188
      %v193 = vmul.f32 %v189, 0.004
      %v194 = vmul.f32 %v190, 0.004
      %v195 = vmul.f32 %v191, 0.004
      %v196 = vmul.f32 %v192, 0.004
      %v197 = vld [vmem:[%s2] sm:$0x1]
      %v199 = vlaneseq
      %v200 = vshrl.u32 %v199, 7
      %v201 = vsub.s32 0, %v200
      %v202 = vrot.slane %v197, %v201
      %v204 = vadd.f32 %v193, %v202
      %v205 = vadd.f32 %v194, %v202
      %v206 = vadd.f32 %v195, %v202
      %v207 = vadd.f32 %v196, %v202
      %v208 = vround.ne.pseudo %v204
      %v209 = vround.ne.pseudo %v205
      %v210 = vround.ne.pseudo %v206
      %v211 = vround.ne.pseudo %v207
      %v212 = vmax.f32 %v208, -128.0
      %v213 = vmax.f32 %v209, -128.0
      %v214 = vmax.f32 %v210, -128.0
      %v215 = vmax.f32 %v211, -128.0
      %v216 = vmin.f32 %v212, 127.0
      %v217 = vmin.f32 %v213, 127.0
      %v218 = vmin.f32 %v214, 127.0
      %v219 = vmin.f32 %v215, 127.0
      %v220 = vtrunc.f32 %v216
      %v221 = vtrunc.f32 %v217
      %v222 = vtrunc.f32 %v218
      %v223 = vtrunc.f32 %v219
      %v224 = vpack.c.f32.eXmY %v220, %v221, 312
      %v228 = vpack.c.f32.eXmY %v222, %v223, 312
      %v232 = vpack.c.b8 %v228, %v224
      %234 = vst [vmem:[#allocation8] sm:$0xff] %v232
    $region29: #{tpu_custom_call.1} parent=1 // pred_fallthru
      _
    // Predicated region
    $region30: #{tpu_custom_call.1} parent=1 // pred_check
      _
    $region31: #{tpu_custom_call.1} parent=1 // pred_check_branch
      %236 = sbr.rel (0) target = $region33
    $region32: #{tpu_custom_call.1} parent=1 // pred_region
      %s238 = ssub.s32 128, 128
      %239 = vsyncadd [#allocation5], %s238
      %s241 = sshll.u32 [#allocation8], 4
      %s242 = int_to_ptr.vmem [resolvable:$true] %s241
      %244 = dma.vmem_to_hbm [thread:$0]  %s242, 128, %s3, [#allocation5]
    $region33: #{tpu_custom_call.1} parent=1 // pred_fallthru
      _
    // Predicated region
    $region34: #{tpu_custom_call.1} parent=1 // pred_check
      _
    $region35: #{tpu_custom_call.1} parent=1 // pred_check_branch
      %246 = sbr.rel (0) target = $region37
    $region36: #{tpu_custom_call.1} parent=1 // pred_region
      %247 = dma.done [#allocation5], 128
    $region37: #{tpu_custom_call.1} parent=1 // pred_fallthru
      _
    %248 = vsyncpa [#allocation4], 1
    %249 = vsyncpa [#allocation7], 1
    %250 = vsyncpa [#allocation5], 1

</llo_original>
